<compile_context>
chip_gen: v5e
topology: v5e:2x2
jax: 0.10.0
libtpu: 0.0.40
codegen_flags: <defaults>
</compile_context>

<pallas_src>
import functools

import jax
import jax.numpy as jnp
from jax import lax
from jax.experimental import pallas as pl
from jax.experimental.pallas import tpu as pltpu


# ----------------------- VMEM planning (generation-aware) -------------------


@functools.lru_cache(maxsize=1)
def _vmem_plan():
    """(tile_byte_budget, vmem_limit_bytes) for this chip generation.

    v5e/v6e: 128 MiB physical VMEM per core (scoped default only 16/32 MiB,
    so raise it explicitly and use big tiles).  v7x: 64 MiB per TensorCore
    shared with compiler scratch -> conservative.  Unknown/interpret -> the
    conservative plan (safe everywhere).
    """
    cap = 0
    try:
        info = pltpu.get_tpu_info()
        cap = int(getattr(info, "vmem_capacity_bytes", 0) or 0)
    except Exception:
        cap = 0
    if cap >= 96 * 1024 * 1024:            # v5e / v6e class (128 MiB VMEM)
        return 24 * 1024 * 1024, 96 * 1024 * 1024
    return 12 * 1024 * 1024, 48 * 1024 * 1024   # v7x class / unknown


def _round_up(x, m):
    return ((x + m - 1) // m) * m


def _live_bytes_per_elem(itemsize):
    # 2x double-buffered input + 2x double-buffered output (I/O dtype) plus
    # an allowance for in-kernel f32 intermediates (x upcast, x*x, sums).
    return 4 * itemsize + 16


def _pick_row_tile(rows, lane_width_padded, itemsize, max_rows=4096):
    """Rows-per-block for (rows, lanes) slabs (rows = sublane axis)."""
    budget, _ = _vmem_plan()
    row_bytes = lane_width_padded * _live_bytes_per_elem(itemsize)
    tile = max(8, budget // max(row_bytes, 1))
    tile = min(tile, max_rows)
    # Keep >= ~4 grid steps when there is enough work (megacore + pipelining).
    tile = min(tile, max(8, pl.cdiv(rows, 4)))
    tile = min(tile, rows)
    sub = 8 * max(1, 4 // itemsize)        # 8 for f32, 16 for bf16, ...
    if tile < rows:
        tile = max(sub, (tile // sub) * sub)
        tile = min(tile, rows)
    return tile


def _pick_lane_tile(hw, c, itemsize, n_outer, max_lanes=65536):
    """Lanes-per-block for channels_first (C, tile_hw) tiles (hw = lane axis)."""
    budget, _ = _vmem_plan()
    c_sub = _round_up(c, 8)                # sublane padding in VMEM/vregs
    lane_bytes = c_sub * _live_bytes_per_elem(itemsize)
    tile = max(128, budget // max(lane_bytes, 1))
    tile = min(tile, max_lanes)
    # Aim for >= ~4 total grid steps across (N, hw-tiles).
    want_tiles = max(1, pl.cdiv(4, max(n_outer, 1)))
    tile = min(tile, max(128, pl.cdiv(hw, want_tiles)))
    tile = min(tile, hw)
    if tile < hw:
        tile = max(128, (tile // 128) * 128)
        tile = min(tile, hw)
    return tile


# ----------------------------- kernels --------------------------------------


def _ln_lane_kernel(x_ref, w_ref, b_ref, o_ref, *, eps, inv_c):
    """channels_last generic path: x (tile_r, C); reduce over the lane axis."""
    x = x_ref[...].astype(jnp.float32)
    mean = jnp.sum(x, axis=-1, keepdims=True) * inv_c
    ex2 = jnp.sum(x * x, axis=-1, keepdims=True) * inv_c
    var = jnp.maximum(ex2 - mean * mean, 0.0)      # biased var, single pass
    inv = lax.rsqrt(var + eps)
    o_ref[...] = ((x - mean) * inv * w_ref[...] + b_ref[...]).astype(o_ref.dtype)


def _ln_sublane_kernel(x_ref, w_ref, b_ref, o_ref, *, eps, inv_c):
    """channels_first path: x (C, tile_hw); reduce over the sublane axis."""
    x = x_ref[...].astype(jnp.float32)
    mean = jnp.sum(x, axis=0, keepdims=True) * inv_c
    ex2 = jnp.sum(x * x, axis=0, keepdims=True) * inv_c
    var = jnp.maximum(ex2 - mean * mean, 0.0)
    inv = lax.rsqrt(var + eps)
    # w_ref/b_ref: (C, 1) -> broadcast along lanes.
    o_ref[...] = ((x - mean) * inv * w_ref[...] + b_ref[...]).astype(o_ref.dtype)


def _ln_grouped_kernel(x_ref, g_ref, w_ref, b_ref, o_ref, *, eps, inv_c):
    """channels_last, small power-of-two C packed along lanes.

    Lane l holds channel (l % C) of pixel (l // C).  g_ref is a constant
    (128,128) block-diagonal ones matrix: x @ g both sums each C-lane group
    and broadcasts the sum back across the group -> segmented reduce on the
    otherwise-idle MXU, fp32 contraction precision.
    """
    x = x_ref[...].astype(jnp.float32)
    g = g_ref[...]
    s1 = jnp.dot(x, g, preferred_element_type=jnp.float32,
                 precision=lax.Precision.HIGHEST)
    s2 = jnp.dot(x * x, g, preferred_element_type=jnp.float32,
                 precision=lax.Precision.HIGHEST)
    mean = s1 * inv_c
    var = jnp.maximum(s2 * inv_c - mean * mean, 0.0)
    inv = lax.rsqrt(var + eps)
    o_ref[...] = ((x - mean) * inv * w_ref[...] + b_ref[...]).astype(o_ref.dtype)


# ----------------------------- wrappers -------------------------------------


def _layernorm_rows(x2d, weight, bias, eps):
    rows, C = x2d.shape
    _, vmem_limit = _vmem_plan()
    w2d = weight.astype(jnp.float32).reshape(1, C)
    b2d = bias.astype(jnp.float32).reshape(1, C)
    c_pad = _round_up(C, 128)
    tile_r = _pick_row_tile(rows, c_pad, x2d.dtype.itemsize)
    grid = (pl.cdiv(rows, tile_r),)
    return pl.pallas_call(
        functools.partial(_ln_lane_kernel, eps=eps, inv_c=1.0 / C),
        out_shape=jax.ShapeDtypeStruct((rows, C), x2d.dtype),
        grid_spec=pltpu.PrefetchScalarGridSpec(
            num_scalar_prefetch=0,
            grid=grid,
            in_specs=[
                pl.BlockSpec((tile_r, C), lambda i: (i, 0)),
                pl.BlockSpec((1, C), lambda i: (0, 0)),
                pl.BlockSpec((1, C), lambda i: (0, 0)),
            ],
            out_specs=pl.BlockSpec((tile_r, C), lambda i: (i, 0)),
        ),
        compiler_params=pltpu.CompilerParams(
            dimension_semantics=("parallel",),
            vmem_limit_bytes=vmem_limit),
    )(x2d, w2d, b2d)


def _layernorm_grouped(x2d, weight, bias, eps):
    rows, C = x2d.shape
    width = 128
    g = width // C                          # pixels packed per 128-lane row
    # Pad rows so the packed slab has a multiple of 8 rows (cheap, contiguous).
    granule = (8 * width) // C
    rows_p = _round_up(rows, granule)
    if rows_p != rows:
        x2d = jnp.pad(x2d, ((0, rows_p - rows), (0, 0)))
    r2 = (rows_p * C) // width
    xg = x2d.reshape(r2, width)             # contiguous reshape: free
    w_t = jnp.tile(weight.astype(jnp.float32), g).reshape(1, width)
    b_t = jnp.tile(bias.astype(jnp.float32), g).reshape(1, width)
    lane = jnp.arange(width)
    g_mat = (lane[:, None] // C == lane[None, :] // C).astype(jnp.float32)

    _, vmem_limit = _vmem_plan()
    tile_r = _pick_row_tile(r2, width, x2d.dtype.itemsize)
    grid = (pl.cdiv(r2, tile_r),)
    out = pl.pallas_call(
        functools.partial(_ln_grouped_kernel, eps=eps, inv_c=1.0 / C),
        out_shape=jax.ShapeDtypeStruct((r2, width), x2d.dtype),
        grid_spec=pltpu.PrefetchScalarGridSpec(
            num_scalar_prefetch=0,
            grid=grid,
            in_specs=[
                pl.BlockSpec((tile_r, width), lambda i: (i, 0)),
                pl.BlockSpec((width, width), lambda i: (0, 0)),
                pl.BlockSpec((1, width), lambda i: (0, 0)),
                pl.BlockSpec((1, width), lambda i: (0, 0)),
            ],
            out_specs=pl.BlockSpec((tile_r, width), lambda i: (i, 0)),
        ),
        compiler_params=pltpu.CompilerParams(
            dimension_semantics=("parallel",),
            vmem_limit_bytes=vmem_limit),
    )(xg, g_mat, w_t, b_t)
    out = out.reshape(rows_p, C)
    if rows_p != rows:
        out = out[:rows]
    return out


def _layernorm_channels_first(x, weight, bias, eps):
    N, C, H, W = x.shape
    hw = H * W
    x3 = x.reshape(N, C, hw)                # contiguous reshape: no transpose
    w2d = weight.astype(jnp.float32).reshape(C, 1)
    b2d = bias.astype(jnp.float32).reshape(C, 1)
    _, vmem_limit = _vmem_plan()
    tile_hw = _pick_lane_tile(hw, C, x.dtype.itemsize, N)
    grid = (N, pl.cdiv(hw, tile_hw))
    out = pl.pallas_call(
        functools.partial(_ln_sublane_kernel, eps=eps, inv_c=1.0 / C),
        out_shape=jax.ShapeDtypeStruct((N, C, hw), x.dtype),
        grid_spec=pltpu.PrefetchScalarGridSpec(
            num_scalar_prefetch=0,
            grid=grid,
            in_specs=[
                pl.BlockSpec((None, C, tile_hw), lambda n, j: (n, 0, j)),
                pl.BlockSpec((C, 1), lambda n, j: (0, 0)),
                pl.BlockSpec((C, 1), lambda n, j: (0, 0)),
            ],
            out_specs=pl.BlockSpec((None, C, tile_hw), lambda n, j: (n, 0, j)),
        ),
        compiler_params=pltpu.CompilerParams(
            dimension_semantics=("parallel", "parallel"),
            vmem_limit_bytes=vmem_limit),
    )(x3, w2d, b2d)
    return out.reshape(N, C, H, W)


class LayerNorm:
    """JAX/Pallas port of the PyTorch LayerNorm module (InvNet variant)."""

    def __init__(self, normalized_shape, eps=1e-6, data_format="channels_last"):
        if data_format not in ("channels_last", "channels_first"):
            raise NotImplementedError
        # Deterministic init matching nn.Parameter(torch.ones/zeros(...)).
        self.weight = jnp.ones((normalized_shape,), dtype=jnp.float32)
        self.bias = jnp.zeros((normalized_shape,), dtype=jnp.float32)
        self.eps = eps
        self.data_format = data_format
        self.normalized_shape = (normalized_shape,)

    def __call__(self, x):
        C = self.normalized_shape[0]
        if self.data_format == "channels_last":
            assert x.shape[-1] == C
            lead = x.shape[:-1]
            x2d = x.reshape(-1, C)
            # Lane-packed MXU segment-sum path for any small power-of-two C.
            use_grouped = (1 <= C <= 64) and (C & (C - 1)) == 0
            if use_grouped:
                y2d = _layernorm_grouped(x2d, self.weight, self.bias, self.eps)
            else:
                y2d = _layernorm_rows(x2d, self.weight, self.bias, self.eps)
            return y2d.reshape(*lead, C)
        else:
            # channels_first: NCHW, normalize over the channel axis (dim 1).
            assert x.ndim == 4 and x.shape[1] == C
            return _layernorm_channels_first(x, self.weight, self.bias, self.eps)


# ----------------------------- references -----------------------------------


def _ref_channels_first(x, w, b, eps):
    u = jnp.mean(x, axis=1, keepdims=True)
    s = jnp.mean((x - u) ** 2, axis=1, keepdims=True)
    xh = (x - u) / jnp.sqrt(s + eps)
    return w[None, :, None, None] * xh + b[None, :, None, None]


def _ref_channels_last(x, w, b, eps):
    u = jnp.mean(x, axis=-1, keepdims=True)
    s = jnp.mean((x - u) ** 2, axis=-1, keepdims=True)
    xh = (x - u) / jnp.sqrt(s + eps)
    return xh * w + b


if __name__ == "__main__":
    key = jax.random.PRNGKey(0)
    k1, k2, k3, k4 = jax.random.split(key, 4)

    C = 4

    # channels_first: NCHW (2, 4, 16, 16) — lane axis = H*W, sublane reduce.
    x_cf = jax.random.normal(k1, (2, C, 16, 16), dtype=jnp.float32)
    ln_cf = LayerNorm(C, eps=1e-6, data_format="channels_first")
    y_cf = jax.block_until_ready(ln_cf(x_cf))
    ref_cf = _ref_channels_first(x_cf, ln_cf.weight, ln_cf.bias, ln_cf.eps)
    assert y_cf.shape == x_cf.shape
    assert jnp.max(jnp.abs(y_cf - ref_cf)) < 1e-4

    # channels_last, small C: NHWC (2, 16, 16, 4) — lane-packed MXU path.
    x_cl = jax.random.normal(k2, (2, 16, 16, C), dtype=jnp.float32)
    ln_cl = LayerNorm(C, eps=1e-6, data_format="channels_last")
    y_cl = jax.block_until_ready(ln_cl(x_cl))
    ref_cl = _ref_channels_last(x_cl, ln_cl.weight, ln_cl.bias, ln_cl.eps)
    assert y_cl.shape == x_cl.shape
    assert jnp.max(jnp.abs(y_cl - ref_cl)) < 1e-4

    # channels_last, wide C (>=128): generic lane-reduce path.
    Cw = 256
    x_wide = jax.random.normal(k3, (4, 8, Cw), dtype=jnp.float32)
    ln_w = LayerNorm(Cw, eps=1e-6, data_format="channels_last")
    y_w = jax.block_until_ready(ln_w(x_wide))
    ref_w = _ref_channels_last(x_wide, ln_w.weight, ln_w.bias, ln_w.eps)
    assert y_w.shape == x_wide.shape
    assert jnp.max(jnp.abs(y_w - ref_w)) < 1e-4

    # channels_last, small C with ragged row count: exercises the row padding.
    x_rg = jax.random.normal(k4, (2, 5, 7, C), dtype=jnp.float32)
    y_rg = jax.block_until_ready(ln_cl(x_rg))
    ref_rg = _ref_channels_last(x_rg, ln_cl.weight, ln_cl.bias, ln_cl.eps)
    assert y_rg.shape == x_rg.shape
    assert jnp.max(jnp.abs(y_rg - ref_rg)) < 1e-4

    print("KERNEL_OK")
</pallas_src>

<mosaic_0001>
module attributes {stable_mosaic.version = 11 : i64} {
  func.func @_ln_sublane_kernel(%arg0: i32, %arg1: i32, %arg2: memref<1x4x128xf32, #tpu.memory_space<vmem>>, %arg3: memref<4x1xf32, #tpu.memory_space<vmem>>, %arg4: memref<4x1xf32, #tpu.memory_space<vmem>>, %arg5: memref<1x4x128xf32, #tpu.memory_space<vmem>>) attributes {dimension_semantics = [#tpu.dimension_semantics<parallel>, #tpu.dimension_semantics<parallel>], iteration_bounds = array<i64: 2, 2>, scalar_prefetch = 0 : i64, scratch_operands = 0 : i64, tpu.core_type = #tpu.core_type<tc>, window_params = [{transform_indices = @transform_0, window_bounds = array<i64: 1, 4, 128>}, {pipeline_mode = #tpu.pipeline_mode<synchronous>, transform_indices = @transform_1, window_bounds = array<i64: 4, 1>}, {pipeline_mode = #tpu.pipeline_mode<synchronous>, transform_indices = @transform_2, window_bounds = array<i64: 4, 1>}, {transform_indices = @transform_3, window_bounds = array<i64: 1, 4, 128>}]} {
    %c0 = arith.constant 0 : index
    %c0_0 = arith.constant 0 : index
    %c0_1 = arith.constant 0 : index
    %0 = vector.load %arg2[%c0, %c0_0, %c0_1] : memref<1x4x128xf32, #tpu.memory_space<vmem>>, vector<1x4x128xf32>
    %1 = vector.shape_cast %0 : vector<1x4x128xf32> to vector<4x128xf32>
    %cst = arith.constant dense<0.000000e+00> : vector<128xf32>
    %2 = vector.multi_reduction <add>, %1, %cst [0] : vector<4x128xf32> to vector<128xf32>
    %3 = vector.shape_cast %2 : vector<128xf32> to vector<1x128xf32>
    %cst_2 = arith.constant 2.500000e-01 : f32
    %4 = vector.broadcast %cst_2 : f32 to vector<1x128xf32>
    %5 = arith.mulf %3, %4 : vector<1x128xf32>
    %6 = arith.mulf %1, %1 : vector<4x128xf32>
    %cst_3 = arith.constant dense<0.000000e+00> : vector<128xf32>
    %7 = vector.multi_reduction <add>, %6, %cst_3 [0] : vector<4x128xf32> to vector<128xf32>
    %8 = vector.shape_cast %7 : vector<128xf32> to vector<1x128xf32>
    %cst_4 = arith.constant 2.500000e-01 : f32
    %9 = vector.broadcast %cst_4 : f32 to vector<1x128xf32>
    %10 = arith.mulf %8, %9 : vector<1x128xf32>
    %11 = arith.mulf %5, %5 : vector<1x128xf32>
    %12 = arith.subf %10, %11 : vector<1x128xf32>
    %cst_5 = arith.constant 0.000000e+00 : f32
    %13 = vector.broadcast %cst_5 : f32 to vector<1x128xf32>
    %14 = arith.maximumf %12, %13 : vector<1x128xf32>
    %cst_6 = arith.constant 9.99999997E-7 : f32
    %15 = vector.broadcast %cst_6 : f32 to vector<1x128xf32>
    %16 = arith.addf %14, %15 : vector<1x128xf32>
    %17 = math.rsqrt %16 : vector<1x128xf32>
    %18 = vector.broadcast %5 : vector<1x128xf32> to vector<4x128xf32>
    %19 = arith.subf %1, %18 : vector<4x128xf32>
    %20 = vector.broadcast %17 : vector<1x128xf32> to vector<4x128xf32>
    %21 = arith.mulf %19, %20 : vector<4x128xf32>
    %c0_7 = arith.constant 0 : index
    %c0_8 = arith.constant 0 : index
    %22 = vector.load %arg3[%c0_7, %c0_8] : memref<4x1xf32, #tpu.memory_space<vmem>>, vector<4x1xf32>
    %23 = vector.broadcast %22 : vector<4x1xf32> to vector<4x128xf32>
    %24 = arith.mulf %21, %23 : vector<4x128xf32>
    %c0_9 = arith.constant 0 : index
    %c0_10 = arith.constant 0 : index
    %25 = vector.load %arg4[%c0_9, %c0_10] : memref<4x1xf32, #tpu.memory_space<vmem>>, vector<4x1xf32>
    %26 = vector.broadcast %25 : vector<4x1xf32> to vector<4x128xf32>
    %27 = arith.addf %24, %26 : vector<4x128xf32>
    %c0_11 = arith.constant 0 : index
    %c0_12 = arith.constant 0 : index
    %c0_13 = arith.constant 0 : index
    %28 = vector.load %arg5[%c0_11, %c0_12, %c0_13] : memref<1x4x128xf32, #tpu.memory_space<vmem>>, vector<1x4x128xf32>
    %29 = vector.shape_cast %28 : vector<1x4x128xf32> to vector<4x128xf32>
    %30 = vector.shape_cast %27 : vector<4x128xf32> to vector<1x4x128xf32>
    tpu.vector_store %arg5[%c0_11, %c0_12, %c0_13], %30 {strides = array<i32>} : memref<1x4x128xf32, #tpu.memory_space<vmem>>, vector<1x4x128xf32>,
    return
  }
  func.func @transform_0(%arg0: i32, %arg1: i32) -> (i32, i32, i32) {
    %c0_i32 = arith.constant 0 : i32
    %c0_i32_0 = arith.constant 0 : i32
    return %arg0, %c0_i32, %arg1 : i32, i32, i32
  }
  func.func @transform_1(%arg0: i32, %arg1: i32) -> (i32, i32) {
    %c0_i32 = arith.constant 0 : i32
    %c0_i32_0 = arith.constant 0 : i32
    %c0_i32_1 = arith.constant 0 : i32
    return %c0_i32, %c0_i32_0 : i32, i32
  }
  func.func @transform_2(%arg0: i32, %arg1: i32) -> (i32, i32) {
    %c0_i32 = arith.constant 0 : i32
    %c0_i32_0 = arith.constant 0 : i32
    %c0_i32_1 = arith.constant 0 : i32
    return %c0_i32, %c0_i32_0 : i32, i32
  }
  func.func @transform_3(%arg0: i32, %arg1: i32) -> (i32, i32, i32) {
    %c0_i32 = arith.constant 0 : i32
    %c0_i32_0 = arith.constant 0 : i32
    return %arg0, %c0_i32, %arg1 : i32, i32, i32
  }
}

</mosaic_0001>

<llo_original>
// kernel: tpu_custom_call.1
$region0: #{tpu_custom_call.1}
  #allocation0 [shape = 'u32[]', space=smem, size = 0x4, offset = 0x4, fixed_abs, tag = 'smem constant byte address 0x4 - core index']
  #allocation1 [shape = 'u32[72,128]{1,0:T(1,128)}', space=vmem, size = 0x9000, scoped, tag = 'internal scratch']
  %s0 = inlined_call_operand.hbm [shape: f32[2,4,256], index: 0, kind: input, shape index: {}]
  %s1 = inlined_call_operand.vmem [shape: f32[4,1], index: 1, kind: input, shape index: {}]
  %s2 = inlined_call_operand.vmem [shape: f32[4,1], index: 2, kind: input, shape index: {}]
  %s3 = inlined_call_operand.hbm [shape: f32[2,4,256], index: 3, kind: output, shape index: {}]
  %s4 = sld [smem:[#allocation0]]
  $region49: #{tpu_custom_call.1} parent=0
    _
  %s6 = ssub.s32 1, %s4
  %s7 = scalar_select 0, %s6, %s4
  $region1: #{tpu_custom_call.1} parent=0
    #allocation2 [shape = 'u8[4096]{0}', space=vmem, size = 0x1000, scoped, tag = 'input window, operand 0']
    #allocation3 [shape = 's32[2]{0}', space=sflag, size = 0x8, scoped, tag = 'scoped memory for tpu_custom_call.1']
    #allocation4 [shape = 's32[2]{0}', space=sflag, size = 0x8, scoped, tag = 'scoped memory for tpu_custom_call.1']
    #allocation5 [shape = 'u8[4096]{0}', space=vmem, size = 0x1000, scoped, tag = 'output window, operand 0']
    %8 = vsyncpa [#allocation3], 0
    %s9 = scalar_lea.sflag [#allocation3], 1
    %10 = vsyncpa %s9, 0
    %11 = vsyncpa [#allocation4], 0
    %s12 = scalar_lea.sflag [#allocation4], 1
    %13 = vsyncpa %s12, 0
    loop: start=0, step=1, limit=6
    $region2: #{tpu_custom_call.1} parent=1 // loop_pre_header
      _
    $region3: #{tpu_custom_call.1} parent=1 // loop_header
      %s15 = sphi 0, %s19
      %p16 = scmp.ge.s32.totalorder %s15, 6
      %s22 = sphi 0, %s34
      %s23 = sphi 0, %s30
      %s24 = sphi 0, %s22
      %s25 = sphi 0, %s23
      %s26 = sphi 0, %s24
      %s27 = sphi 0, %s25
      %s39 = sphi 0, %s41
      %s42 = sphi 0, %s39
      %s43 = sphi 0, %s42
      %s59 = sphi 0, %s43
      %s63 = sphi 0, %s63
      %s65 = sphi 0, %s63
      %s66 = sphi 0, %s65
      %s80 = sphi 0, %s66
      %s84 = sphi 0, %s84
      %s86 = sphi 0, %s84
      %s87 = sphi 0, %s86
      %s101 = sphi 0, %s87
      %s109 = sphi 0, %s111
      %s112 = sphi 0, %s109
      %s113 = sphi 0, %s112
      %s129 = sphi 0, %s113
    $region4: #{tpu_custom_call.1} parent=1 // loop_header_branch
      %18 = sbr.rel (%p16) target = $region8
    $region5: #{tpu_custom_call.1} parent=1 // loop_body
      %s20 = ssub.s32 %s15, 1
      %s21 = ssub.s32 %s15, 2
      %s28 = sadd.s32 1, %s23
      %p29 = scmp.ge.s32.totalorder %s28, 2
      %s30 = scalar_select %p29, 0, %s28
      %s31 = sadd.s32 1, %s22
      %s32 = scalar_select %p29, %s31, %s22
      %p33 = scmp.ge.s32.totalorder %s32, 2
      %s34 = scalar_select %p33, 0, %s32
      %s35 = ssub.s32 %s22, %s34
      %s36 = ssub.s32 %s23, %s30
      %s37 = sor.u32 %s35, %s36
      %p38 = scmp.eq.s32.totalorder %s37, 0
      %s40 = sadd.s32 %s39, 1
      %s41 = scalar_select %p38, %s39, %s40
      %p44 = pneg %p38
      %p45 = scmp.eq.s32.totalorder %s15, 3
      %p46 = por %p44, %p45
      %p47 = scmp.ne.s32.totalorder %s39, %s42
      %p48 = scmp.eq.s32.totalorder %s15, 0
      %p49 = por %p47, %p48
      %p50 = scmp.ne.s32.totalorder %s39, %s42
      %p51 = scmp.eq.s32.totalorder %s20, 3
      %p52 = por %p50, %p51
      %p53 = scmp.ne.s32.totalorder %s42, %s43
      %p54 = scmp.eq.s32.totalorder %s20, 0
      %p55 = por %p53, %p54
      %p56 = scmp.ne.s32.totalorder %s42, %s43
      %p57 = scmp.eq.s32.totalorder %s21, 3
      %p58 = por %p56, %p57
      %p60 = scmp.ne.s32.totalorder %s43, %s59
      %p61 = scmp.eq.s32.totalorder %s21, 0
      %p62 = por %p60, %p61
      %s64 = sadd.s32 %s63, 1
      %p67 = scmp.eq.s32.totalorder %s15, 3
      %p68 = scmp.ne.s32.totalorder %s63, %s65
      %p69 = scmp.eq.s32.totalorder %s15, 0
      %p70 = por %p68, %p69
      %p71 = scmp.ne.s32.totalorder %s63, %s65
      %p72 = scmp.eq.s32.totalorder %s20, 3
      %p73 = por %p71, %p72
      %p74 = scmp.ne.s32.totalorder %s65, %s66
      %p75 = scmp.eq.s32.totalorder %s20, 0
      %p76 = por %p74, %p75
      %p77 = scmp.ne.s32.totalorder %s65, %s66
      %p78 = scmp.eq.s32.totalorder %s21, 3
      %p79 = por %p77, %p78
      %p81 = scmp.ne.s32.totalorder %s66, %s80
      %p82 = scmp.eq.s32.totalorder %s21, 0
      %p83 = por %p81, %p82
      %s85 = sadd.s32 %s84, 1
      %p88 = scmp.eq.s32.totalorder %s15, 3
      %p89 = scmp.ne.s32.totalorder %s84, %s86
      %p90 = scmp.eq.s32.totalorder %s15, 0
      %p91 = por %p89, %p90
      %p92 = scmp.ne.s32.totalorder %s84, %s86
      %p93 = scmp.eq.s32.totalorder %s20, 3
      %p94 = por %p92, %p93
      %p95 = scmp.ne.s32.totalorder %s86, %s87
      %p96 = scmp.eq.s32.totalorder %s20, 0
      %p97 = por %p95, %p96
      %p98 = scmp.ne.s32.totalorder %s86, %s87
      %p99 = scmp.eq.s32.totalorder %s21, 3
      %p100 = por %p98, %p99
      %p102 = scmp.ne.s32.totalorder %s87, %s101
      %p103 = scmp.eq.s32.totalorder %s21, 0
      %p104 = por %p102, %p103
      %s105 = ssub.s32 %s22, %s34
      %s106 = ssub.s32 %s23, %s30
      %s107 = sor.u32 %s105, %s106
      %p108 = scmp.eq.s32.totalorder %s107, 0
      %s110 = sadd.s32 %s109, 1
      %s111 = scalar_select %p108, %s109, %s110
      %p114 = pneg %p108
      %p115 = scmp.eq.s32.totalorder %s15, 3
      %p116 = por %p114, %p115
      %p117 = scmp.ne.s32.totalorder %s109, %s112
      %p118 = scmp.eq.s32.totalorder %s15, 0
      %p119 = por %p117, %p118
      %p120 = scmp.ne.s32.totalorder %s109, %s112
      %p121 = scmp.eq.s32.totalorder %s20, 3
      %p122 = por %p120, %p121
      %p123 = scmp.ne.s32.totalorder %s112, %s113
      %p124 = scmp.eq.s32.totalorder %s20, 0
      %p125 = por %p123, %p124
      %p126 = scmp.ne.s32.totalorder %s112, %s113
      %p127 = scmp.eq.s32.totalorder %s21, 3
      %p128 = por %p126, %p127
      %p130 = scmp.ne.s32.totalorder %s113, %s129
      %p131 = scmp.eq.s32.totalorder %s21, 0
      %p132 = por %p130, %p131
      %p133 = scmp.le.s32.totalorder 1, %s15
      %p134 = scmp.lt.s32.totalorder %s15, 5
      %p135 = pnand %p133, %p134
      %p136 = pneg %p135
      // Predicated region
      $region9: #{tpu_custom_call.1} parent=5 // pred_check
        _
      $region10: #{tpu_custom_call.1} parent=5 // pred_check_branch
        %138 = sbr.rel (%p135) target = $region12
      $region11: #{tpu_custom_call.1} parent=5 // pred_region
        %s139 = ssub.s32 %s15, 1
        // Predicated region
        $region13: #{tpu_custom_call.1} parent=11 // pred_check
          %p140 = pneg %p76
        $region14: #{tpu_custom_call.1} parent=11 // pred_check_branch
          %142 = sbr.rel (%p140) target = $region16
        $region15: #{tpu_custom_call.1} parent=11 // pred_region
          _
        $region16: #{tpu_custom_call.1} parent=11 // pred_fallthru
          _
        // Predicated region
        $region17: #{tpu_custom_call.1} parent=11 // pred_check
          %p143 = pneg %p97
        $region18: #{tpu_custom_call.1} parent=11 // pred_check_branch
          %145 = sbr.rel (%p143) target = $region20
        $region19: #{tpu_custom_call.1} parent=11 // pred_region
          _
        $region20: #{tpu_custom_call.1} parent=11 // pred_fallthru
          _
      $region12: #{tpu_custom_call.1} parent=5 // pred_fallthru
        _
      %p146 = scmp.lt.s32.totalorder %s15, 4
      // Predicated region
      $region21: #{tpu_custom_call.1} parent=5 // pred_check
        %p147 = pneg %p146
      $region22: #{tpu_custom_call.1} parent=5 // pred_check_branch
        %149 = sbr.rel (%p147) target = $region24
      $region23: #{tpu_custom_call.1} parent=5 // pred_region
        // Predicated region
        $region25: #{tpu_custom_call.1} parent=23 // pred_check
          %p150 = pneg %p49
        $region26: #{tpu_custom_call.1} parent=23 // pred_check_branch
          %152 = sbr.rel (%p150) target = $region28
        $region27: #{tpu_custom_call.1} parent=23 // pred_region
          %s153 = sand.u32 %s39, 1
          %s154 = scalar_lea.sflag [#allocation3], %s153
          %s155 = sand.u32 %s39, 1
          %s156 = smul.addr %s155, 4
          %s157 = scalar_lea.vmem [#allocation2], %s156
          %159 = vsyncadd %s154, 0
          %s160 = smul.addr %s22, 2
          %s161 = sadd.s32 %s23, %s160
          %s162 = smul.addr %s161, 4
          %s163 = scalar_lea.hbm %s0, %s162
          %s165 = sshll.u32 %s163, 4
          %s166 = int_to_ptr.hbm [resolvable:$true] %s165
          %s167 = sshll.u32 %s157, 4
          %s168 = int_to_ptr.vmem [resolvable:$true] %s167
          %170 = dma.hbm_to_vmem [thread:$0]  %s166, 64, %s168, %s154
        $region28: #{tpu_custom_call.1} parent=23 // pred_fallthru
          _
      $region24: #{tpu_custom_call.1} parent=5 // pred_fallthru
        _
      %p171 = scmp.le.s32.totalorder 1, %s15
      %p172 = scmp.lt.s32.totalorder %s15, 5
      %p173 = pnand %p171, %p172
      %p174 = pneg %p173
      // Predicated region
      $region29: #{tpu_custom_call.1} parent=5 // pred_check
        _
      $region30: #{tpu_custom_call.1} parent=5 // pred_check_branch
        %176 = sbr.rel (%p173) target = $region32
      $region31: #{tpu_custom_call.1} parent=5 // pred_region
        %s177 = ssub.s32 %s15, 1
        %s178 = sand.u32 %s42, 1
        %s179 = scalar_lea.sflag [#allocation3], %s178
        %s180 = sand.u32 %s42, 1
        %s181 = smul.addr %s180, 4
        %s182 = scalar_lea.vmem [#allocation2], %s181
        // Predicated region
        $region33: #{tpu_custom_call.1} parent=31 // pred_check
          %p183 = pneg %p55
        $region34: #{tpu_custom_call.1} parent=31 // pred_check_branch
          %185 = sbr.rel (%p183) target = $region36
        $region35: #{tpu_custom_call.1} parent=31 // pred_region
          %187 = dma.done %s179, 64
        $region36: #{tpu_custom_call.1} parent=31 // pred_fallthru
          _
        %s188 = sand.u32 %s42, 1
        %s189 = scalar_lea.sflag [#allocation3], %s188
        %s190 = sand.u32 %s42, 1
        %s191 = smul.addr %s190, 4
        %s192 = scalar_lea.vmem [#allocation2], %s191
        %p193 = pneg %p55
        %p194 = pneg %p52
        %p195 = pneg %p76
        %p196 = pneg %p73
        %p197 = pneg %p97
        %p198 = pneg %p94
        %p199 = pneg %p125
        %p200 = pneg %p122
        %s201 = sand.u32 %s112, 1
        %s202 = scalar_lea.sflag [#allocation4], %s201
        %s203 = sand.u32 %s112, 1
        %s204 = smul.addr %s203, 4
        %s205 = scalar_lea.vmem [#allocation5], %s204
        %v206 = vld [vmem:[%s182] sm:$0xf]
        %vm207 = vcmask 1043456
        %v208 = vsel %vm207, %v206, 0.0
        %v209 = vrot.slane %v208, 4
        %v210 = vadd.f32 %v208, %v209
        %v211 = vrot.slane %v210, 2
        %v212 = vadd.f32 %v210, %v211
        %v213 = vrot.slane %v212, 1
        %v214 = vadd.f32 %v212, %v213
        %v215 = vmul.f32 %v214, 0.25
        %v216 = vmul.f32 %v206, %v206
        %v217 = vsel %vm207, %v216, 0.0
        %v218 = vrot.slane %v217, 4
        %v219 = vadd.f32 %v217, %v218
        %v220 = vrot.slane %v219, 2
        %v221 = vadd.f32 %v219, %v220
        %v222 = vrot.slane %v221, 1
        %v223 = vadd.f32 %v221, %v222
        %v224 = vmul.f32 %v223, 0.25
        %v225 = vmul.f32 %v215, %v215
        %v226 = vsub.f32 %v224, %v225
        %v227 = vmax.f32 %v226, 0.0
        %v228 = vadd.f32 %v227, 1e-06
        %v229 = vrsqrt.pop %v228
        %v230 = vmul.f32 %v229, %v228
        %v231 = vmul.f32 %v230, %v229
        %v232 = vmul.f32 0.5, %v231
        %v233 = vsub.f32 1.5, %v232
        %v234 = vmul.f32 %v229, %v233
        %vm235 = vweird.f32 %v228
        %vm236 = vweird.f32 %v229
        %vm237 = vmor %vm235, %vm236
        %v238 = vsel %vm237, %v229, %v234
        %v239 = vsub.f32 %v206, %v215
        %v240 = vmul.f32 %v239, %v238
        %v241 = vld [vmem:[%s1] sm:$0xf]
        %243 = vset.pattern.permute.xlu0 0
        %244 = vperm.xlu0 %243, %v241
        %v245 = vpop.permute.xlu0 %244
        %v247 = vmul.f32 %v240, %v245
        %v248 = vld [vmem:[%s2] sm:$0xf]
        %250 = vset.pattern.permute.xlu0 0
        %251 = vperm.xlu0 %250, %v248
        %v252 = vpop.permute.xlu0 %251
        %v254 = vadd.f32 %v247, %v252
        %255 = vst [vmem:[%s205] sm:$0xf] %v254
        %s256 = sand.u32 %s112, 1
        %s257 = scalar_lea.sflag [#allocation4], %s256
        %s258 = sand.u32 %s112, 1
        %s259 = smul.addr %s258, 4
        %s260 = scalar_lea.vmem [#allocation5], %s259
        // Predicated region
        $region37: #{tpu_custom_call.1} parent=31 // pred_check
          %p261 = pneg %p122
        $region38: #{tpu_custom_call.1} parent=31 // pred_check_branch
          %263 = sbr.rel (%p261) target = $region40
        $region39: #{tpu_custom_call.1} parent=31 // pred_region
          %265 = vsyncadd %s257, 0
          %s266 = smul.addr %s24, 2
          %s267 = sadd.s32 %s25, %s266
          %s268 = smul.addr %s267, 4
          %s269 = scalar_lea.hbm %s3, %s268
          %s271 = sshll.u32 %s260, 4
          %s272 = int_to_ptr.vmem [resolvable:$true] %s271
          %s273 = sshll.u32 %s269, 4
          %s274 = int_to_ptr.hbm [resolvable:$true] %s273
          %276 = dma.vmem_to_hbm [thread:$0]  %s272, 64, %s274, %s257
        $region40: #{tpu_custom_call.1} parent=31 // pred_fallthru
          _
      $region32: #{tpu_custom_call.1} parent=5 // pred_fallthru
        _
      %p277 = scmp.le.s32.totalorder 2, %s15
      // Predicated region
      $region41: #{tpu_custom_call.1} parent=5 // pred_check
        %p278 = pneg %p277
      $region42: #{tpu_custom_call.1} parent=5 // pred_check_branch
        %280 = sbr.rel (%p278) target = $region44
      $region43: #{tpu_custom_call.1} parent=5 // pred_region
        %s281 = ssub.s32 %s15, 2
        // Predicated region
        $region45: #{tpu_custom_call.1} parent=43 // pred_check
          %p282 = pneg %p128
        $region46: #{tpu_custom_call.1} parent=43 // pred_check_branch
          %284 = sbr.rel (%p282) target = $region48
        $region47: #{tpu_custom_call.1} parent=43 // pred_region
          %s285 = sand.u32 %s113, 1
          %s286 = scalar_lea.sflag [#allocation4], %s285
          %s287 = sand.u32 %s113, 1
          %s288 = smul.addr %s287, 4
          %s289 = scalar_lea.vmem [#allocation5], %s288
          %291 = dma.done %s286, 64
        $region48: #{tpu_custom_call.1} parent=43 // pred_fallthru
          _
      $region44: #{tpu_custom_call.1} parent=5 // pred_fallthru
        _
    $region6: #{tpu_custom_call.1} parent=1 // loop_footer
      %s19 = sadd.s32 1, %s15
    $region7: #{tpu_custom_call.1} parent=1 // loop_footer_branch
      %14 = sbr.rel target = $region3
    $region8: #{tpu_custom_call.1} parent=1 // loop_exit
      _
    %292 = vsyncpa [#allocation3], 1
    %s293 = scalar_lea.sflag [#allocation3], 1
    %294 = vsyncpa %s293, 1
    %295 = vsyncpa [#allocation4], 1
    %s296 = scalar_lea.sflag [#allocation4], 1
    %297 = vsyncpa %s296, 1

</llo_original>
